<compile_context>
chip_gen: v5e
topology: v5e:2x2
jax: 0.10.0
libtpu: 0.0.40
codegen_flags: <defaults>
</compile_context>

<pallas_src>
import functools

import jax
import jax.numpy as jnp
from jax.experimental import pallas as pl
from jax.experimental.pallas import tpu as pltpu


# --------------------------------------------------------------------------------------
# Shared in-kernel helpers
# --------------------------------------------------------------------------------------
def _gate_from_context(ctx_col, cmat_ref, pvec_ref, planes):
    """channel_mul_conv: Conv1x1(C->P) -> LayerNorm([P,1,1]) -> ReLU -> Conv1x1(P->C) -> sigmoid.

    ctx_col: (C, 1) f32 pooled context.  Returns the (C, 1) f32 gate.
    Everything here is tiny (C x P): VPU broadcast-multiplies + XLU reduces.
    """
    P = planes
    w1t = cmat_ref[:, 0:P]               # (C, P)  Conv1x1 C->P weight, transposed
    w2 = cmat_ref[:, P:2 * P]            # (C, P)  Conv1x1 P->C weight
    b2 = cmat_ref[:, 2 * P:2 * P + 1]    # (C, 1)
    b1 = pvec_ref[0:1, :]                # (1, P)
    gamma = pvec_ref[1:2, :]             # (1, P)
    beta = pvec_ref[2:3, :]              # (1, P)

    h = jnp.sum(w1t * ctx_col, axis=0, keepdims=True) + b1        # (1, P)
    mu = jnp.mean(h)
    var = jnp.mean((h - mu) * (h - mu))
    hn = (h - mu) * jax.lax.rsqrt(var + 1e-5)
    hn = jnp.maximum(hn * gamma + beta, 0.0)
    term = jnp.sum(w2 * hn, axis=-1, keepdims=True) + b2           # (C, 1)
    return jax.nn.sigmoid(term)                                    # (C, 1) f32


def _matmul_precision(io_dtype):
    # f32 inputs: force the f32-accurate MXU algorithm (default could truncate to bf16).
    # bf16 inputs: products are already exact on the MXU, accumulate in f32.
    return (jax.lax.Precision.HIGHEST if io_dtype == jnp.float32
            else jax.lax.Precision.DEFAULT)


# --------------------------------------------------------------------------------------
# Fused single-pass kernel: one (C, HW) block per batch element
# --------------------------------------------------------------------------------------
def _gcb_fused_kernel(x_ref, wm_ref, cmat_ref, pvec_ref, bm_ref, out_ref, *, planes):
    # x_ref:   (1, C, HW)  activations (f32 or bf16)
    # wm_ref:  (1, C)      conv_mask weight (row layout -> natural MXU matvec)
    # cmat_ref:(C, 2P+1)   [w1^T | w2 | b2]
    # pvec_ref:(3, P)      rows: b1, ln_gamma, ln_beta
    # bm_ref:  (1, 1) SMEM conv_mask bias (scalar)
    f32 = jnp.float32
    x2 = x_ref[0]                                    # (C, HW), I/O dtype
    io_dt = x2.dtype
    prec = _matmul_precision(io_dt)

    # ---- attention logits (1, HW) on the MXU (VPU stays free; no (C,HW) f32 temp) ----
    logits = jnp.dot(wm_ref[...].astype(io_dt), x2,
                     precision=prec, preferred_element_type=f32)
    logits = logits + bm_ref[0, 0]

    # ---- softmax over HW ----
    m = jnp.max(logits, axis=-1, keepdims=True)       # (1, 1)
    e = jnp.exp(logits - m)                           # (1, HW) f32
    denom = jnp.sum(e, axis=-1, keepdims=True)        # (1, 1), >= 1
    inv = pl.reciprocal(denom, approx=True)           # EUP seed (free slot)
    inv = inv * (2.0 - denom * inv)                   # Newton step 1
    inv = inv * (2.0 - denom * inv)                   # Newton step 2 (~f32 exact)

    # ---- context (C, 1) = x @ softmax(logits)^T on the MXU, scaled by 1/denom ----
    ctx = jax.lax.dot_general(x2, e.astype(io_dt),
                              (((1,), (1,)), ((), ())),
                              precision=prec, preferred_element_type=f32) * inv

    gate = _gate_from_context(ctx, cmat_ref, pvec_ref, planes)     # (C, 1) f32

    # ---- out = x * gate (broadcast over HW), multiply + store in the I/O dtype ----
    out_ref[0] = x2 * gate.astype(io_dt)


# --------------------------------------------------------------------------------------
# Two-pass fallback: HW-tiled online-softmax pooling kernel (gate apply is left to XLA)
# --------------------------------------------------------------------------------------
def _gcb_pool_kernel(x_ref, wm_ref, cmat_ref, pvec_ref, bm_ref, gate_ref,
                     m_sc, d_sc, ctx_sc, *, planes, hw_total, hw_tile):
    f32 = jnp.float32
    t = pl.program_id(1)
    nt = pl.num_programs(1)

    @pl.when(t == 0)
    def _():
        m_sc[...] = jnp.full_like(m_sc, -jnp.inf)
        d_sc[...] = jnp.zeros_like(d_sc)
        ctx_sc[...] = jnp.zeros_like(ctx_sc)

    x2 = x_ref[0]                                     # (C, hw_tile), I/O dtype
    io_dt = x2.dtype
    prec = _matmul_precision(io_dt)

    # Edge blocks are padded with unspecified data: mask x and the logits explicitly.
    col = jax.lax.broadcasted_iota(jnp.int32, (1, hw_tile), 1) + t * hw_tile
    valid = col < hw_total                            # (1, hw_tile)
    x2m = jnp.where(valid, x2, jnp.zeros_like(x2))    # (C, hw_tile)

    logits = jnp.dot(wm_ref[...].astype(io_dt), x2m,
                     precision=prec, preferred_element_type=f32) + bm_ref[0, 0]
    logits = jnp.where(valid, logits, -jnp.inf)       # (1, hw_tile)

    # ---- online softmax: running max / denom / context ----
    m_prev = m_sc[...]                                # (1, 1)
    m_new = jnp.maximum(m_prev, jnp.max(logits, axis=-1, keepdims=True))
    scale = jnp.exp(m_prev - m_new)                   # (1, 1); 0 on the first tile
    p = jnp.exp(logits - m_new)                       # (1, hw_tile)
    d_sc[...] = scale * d_sc[...] + jnp.sum(p, axis=-1, keepdims=True)
    ctx_sc[...] = scale * ctx_sc[...] + jax.lax.dot_general(
        x2m, p.astype(io_dt), (((1,), (1,)), ((), ())),
        precision=prec, preferred_element_type=f32)
    m_sc[...] = m_new

    @pl.when(t == nt - 1)
    def _():
        denom = d_sc[...]
        inv = pl.reciprocal(denom, approx=True)
        inv = inv * (2.0 - denom * inv)
        inv = inv * (2.0 - denom * inv)
        gate_ref[0] = _gate_from_context(ctx_sc[...] * inv, cmat_ref, pvec_ref, planes)


# --------------------------------------------------------------------------------------
# Wrapper
# --------------------------------------------------------------------------------------
@functools.lru_cache(maxsize=1)
def _vmem_ceiling_bytes():
    cap = 64 << 20           # conservative default (v7x physical VMEM per TensorCore)
    try:
        cap = int(getattr(pltpu.get_tpu_info(), "vmem_capacity_bytes", cap))
    except Exception:
        pass
    # Headroom for compiler-internal scratch; ~100 MiB on v5e/v6e, ~48 MiB on v7x.
    return int(min(max(cap - (16 << 20), 32 << 20), 100 << 20))


@functools.partial(jax.jit, static_argnames=("force_two_pass", "two_pass_hw_tile"))
def global_context_block(x_nchw, params, *, force_two_pass=False, two_pass_hw_tile=None):
    """GlobalContextBlock forward (pooling_type='att', fusion_types='channel_mul').

    x_nchw: (B, C, H, W) float32 or bfloat16.  params: dict of f32 weights.
    """
    B, C, H, W = x_nchw.shape
    HW = H * W
    P = params["w1"].shape[0]
    itemsize = jnp.dtype(x_nchw.dtype).itemsize
    f32 = jnp.float32

    # Metadata-only reshape; no padding / slicing HBM round-trips.
    x_flat = x_nchw.reshape(B, C, HW)

    # Parameter packing: few operands to pipeline, little (8,128) padding waste.
    wm_row = params["w_mask"].reshape(1, C).astype(f32)                              # (1, C)
    cmat = jnp.concatenate([params["w1"].astype(f32).T,                              # (C, P)
                            params["w2"].astype(f32),                                # (C, P)
                            params["b2"].reshape(C, 1).astype(f32)], axis=1)         # (C, 2P+1)
    pvec = jnp.concatenate([params["b1"].reshape(1, P).astype(f32),
                            params["ln_gamma"].reshape(1, P).astype(f32),
                            params["ln_beta"].reshape(1, P).astype(f32)], axis=0)    # (3, P)
    bm = params["b_mask"].reshape(1, 1).astype(f32)                                  # SMEM scalar

    param_bytes = 4 * (wm_row.size + cmat.size + pvec.size + 1)
    vmem_ceiling = _vmem_ceiling_bytes()

    # Fused single-pass path iff the (C, HW) in/out blocks (double-buffered, MXU dots leave
    # no (C,HW) f32 temps) fit the device's VMEM ceiling.
    blk_bytes = C * HW * itemsize
    fused_need = 5 * blk_bytes + 4 * param_bytes + (2 << 20)
    use_fused = (not force_two_pass) and (fused_need <= vmem_ceiling)

    if use_fused:
        cost = pl.CostEstimate(
            flops=int(6 * B * C * HW),
            transcendentals=int(B * (HW + C + 2 * P + 8)),
            bytes_accessed=int(2 * B * C * HW * itemsize + param_bytes),
        )
        out = pl.pallas_call(
            functools.partial(_gcb_fused_kernel, planes=P),
            out_shape=jax.ShapeDtypeStruct((B, C, HW), x_flat.dtype),
            grid_spec=pltpu.PrefetchScalarGridSpec(
                num_scalar_prefetch=0,
                grid=(B,),
                in_specs=[
                    pl.BlockSpec((1, C, HW), lambda b: (b, 0, 0)),          # x
                    pl.BlockSpec((1, C), lambda b: (0, 0)),                 # w_mask row
                    pl.BlockSpec((C, 2 * P + 1), lambda b: (0, 0)),         # [w1^T | w2 | b2]
                    pl.BlockSpec((3, P), lambda b: (0, 0)),                 # [b1; gamma; beta]
                    pl.BlockSpec(memory_space=pltpu.MemorySpace.SMEM),      # b_mask scalar
                ],
                out_specs=pl.BlockSpec((1, C, HW), lambda b: (b, 0, 0)),
            ),
            compiler_params=pltpu.CompilerParams(
                dimension_semantics=("parallel",),
                vmem_limit_bytes=vmem_ceiling,
            ),
            cost_estimate=cost,
        )(x_flat, wm_row, cmat, pvec, bm)
        return out.reshape(B, C, H, W)

    # ---- Two-pass fallback: HW-tiled online-softmax pooling, then x * gate in XLA ----
    if HW <= 128:
        hw_tile = HW
    elif two_pass_hw_tile is not None:
        hw_tile = HW if two_pass_hw_tile >= HW else max(128, (two_pass_hw_tile // 128) * 128)
    else:
        tile_target = max(vmem_ceiling // 8, 1 << 20)
        tile = max(128, (tile_target // max(C * itemsize, 1)) // 128 * 128)
        hw_tile = HW if tile >= HW else tile
    n_tiles = -(-HW // hw_tile)

    cost = pl.CostEstimate(
        flops=int(5 * B * C * HW),
        transcendentals=int(B * (HW + C + 2 * P + 8 * n_tiles)),
        bytes_accessed=int(B * C * HW * itemsize + 4 * B * C + param_bytes),
    )
    gate = pl.pallas_call(
        functools.partial(_gcb_pool_kernel, planes=P, hw_total=HW, hw_tile=hw_tile),
        out_shape=jax.ShapeDtypeStruct((B, C, 1), jnp.float32),
        grid_spec=pltpu.PrefetchScalarGridSpec(
            num_scalar_prefetch=0,
            grid=(B, n_tiles),
            in_specs=[
                pl.BlockSpec((1, C, hw_tile), lambda b, t: (b, 0, t)),      # x tile
                pl.BlockSpec((1, C), lambda b, t: (0, 0)),                  # w_mask row
                pl.BlockSpec((C, 2 * P + 1), lambda b, t: (0, 0)),          # [w1^T | w2 | b2]
                pl.BlockSpec((3, P), lambda b, t: (0, 0)),                  # [b1; gamma; beta]
                pl.BlockSpec(memory_space=pltpu.MemorySpace.SMEM),          # b_mask scalar
            ],
            out_specs=pl.BlockSpec((1, C, 1), lambda b, t: (b, 0, 0)),      # gate (revisited)
            scratch_shapes=[pltpu.VMEM((1, 1), jnp.float32),                # running max
                            pltpu.VMEM((1, 1), jnp.float32),                # running denom
                            pltpu.VMEM((C, 1), jnp.float32)],               # running context
        ),
        compiler_params=pltpu.CompilerParams(
            dimension_semantics=("parallel", "arbitrary"),
            vmem_limit_bytes=vmem_ceiling,
        ),
        cost_estimate=cost,
    )(x_flat, wm_row, cmat, pvec, bm)

    # Gate apply: a pure broadcast-multiply -- XLA already runs it at the HBM roofline
    # (and shards it across both TensorCores on v7x), so no Pallas kernel is needed here.
    out = x_flat * gate.astype(x_flat.dtype)
    return out.reshape(B, C, H, W)


# --------------------------------------------------------------------------------------
# Pure-JAX reference matching the PyTorch forward semantics
# --------------------------------------------------------------------------------------
def reference_gcb(x, params):
    B, C, H, W = x.shape
    HW = H * W
    xf = x.reshape(B, C, HW)
    logits = jnp.einsum("oc,bcs->bos", params["w_mask"], xf) + params["b_mask"][None]  # (B,1,HW)
    probs = jax.nn.softmax(logits, axis=2)                                             # (B,1,HW)
    context = jnp.einsum("bcs,bos->bc", xf, probs)[..., None]                          # (B,C,1)
    h = jnp.einsum("pc,bco->bpo", params["w1"], context) + params["b1"][None]          # (B,P,1)
    mu = jnp.mean(h, axis=(1, 2), keepdims=True)
    var = jnp.mean((h - mu) ** 2, axis=(1, 2), keepdims=True)
    hn = (h - mu) / jnp.sqrt(var + 1e-5)
    hn = hn * params["ln_gamma"][None] + params["ln_beta"][None]
    hn = jnp.maximum(hn, 0.0)
    term = jnp.einsum("cp,bpo->bco", params["w2"], hn) + params["b2"][None]            # (B,C,1)
    gate = jax.nn.sigmoid(term)[..., None]                                             # (B,C,1,1)
    return x * gate


if __name__ == "__main__":
    B, C, H, W = 2, 16, 16, 16
    ratio = 0.25
    P = int(C * ratio)  # planes = 4

    key = jax.random.PRNGKey(0)
    keys = jax.random.split(key, 8)

    x = jax.random.normal(keys[0], (B, C, H, W), dtype=jnp.float32)

    params = {
        # conv_mask: Conv2d(C, 1, k=1)  -> weight (1,C), bias (1,1)
        "w_mask": 0.1 * jax.random.normal(keys[1], (1, C), dtype=jnp.float32),
        "b_mask": 0.1 * jax.random.normal(keys[2], (1, 1), dtype=jnp.float32),
        # channel_mul_conv[0]: Conv2d(C, P, k=1)
        "w1": 0.1 * jax.random.normal(keys[3], (P, C), dtype=jnp.float32),
        "b1": 0.1 * jax.random.normal(keys[4], (P, 1), dtype=jnp.float32),
        # channel_mul_conv[1]: LayerNorm([P,1,1])
        "ln_gamma": jnp.ones((P, 1), dtype=jnp.float32),
        "ln_beta": jnp.zeros((P, 1), dtype=jnp.float32),
        # channel_mul_conv[3]: Conv2d(P, C, k=1)
        "w2": 0.1 * jax.random.normal(keys[5], (C, P), dtype=jnp.float32),
        "b2": 0.1 * jax.random.normal(keys[6], (C, 1), dtype=jnp.float32),
    }

    # 1) f32, lane-aligned spatial size (HW = 256), fused single-pass path
    out = jax.block_until_ready(global_context_block(x, params))
    ref = jax.block_until_ready(reference_gcb(x, params))
    assert out.shape == (B, C, H, W)
    assert jnp.allclose(out, ref, atol=1e-5, rtol=1e-5), "f32 aligned mismatch vs reference"

    # 2) f32, HW not a multiple of 128 (7x7 = 49): no wrapper padding, masked stores only
    x7 = jax.random.normal(keys[7], (B, C, 7, 7), dtype=jnp.float32)
    out7 = jax.block_until_ready(global_context_block(x7, params))
    ref7 = jax.block_until_ready(reference_gcb(x7, params))
    assert jnp.allclose(out7, ref7, atol=1e-5, rtol=1e-5), "f32 odd-HW mismatch vs reference"

    # 3) bf16 activations end-to-end on the HBM path (params stay f32, f32 accumulation)
    xb = x.astype(jnp.bfloat16)
    outb = jax.block_until_ready(global_context_block(xb, params))
    refb = reference_gcb(xb.astype(jnp.float32), params)
    assert outb.dtype == jnp.bfloat16
    assert jnp.allclose(outb.astype(jnp.float32), refb, atol=5e-2, rtol=5e-2), "bf16 mismatch"

    # 4) forced HW-tiled two-pass (online-softmax) fallback, with a partial last tile
    x13 = jax.random.normal(keys[4], (B, C, 13, 13), dtype=jnp.float32)   # HW = 169
    out2 = jax.block_until_ready(
        global_context_block(x13, params, force_two_pass=True, two_pass_hw_tile=128))
    ref2 = jax.block_until_ready(reference_gcb(x13, params))
    assert jnp.allclose(out2, ref2, atol=1e-4, rtol=1e-4), "two-pass mismatch vs reference"

    print("KERNEL_OK")
</pallas_src>

<mosaic_0001>
module attributes {stable_mosaic.version = 11 : i64} {
  func.func @_gcb_fused_kernel(%arg0: i32, %arg1: memref<1x16x256xf32, #tpu.memory_space<vmem>>, %arg2: memref<1x16xf32, #tpu.memory_space<vmem>>, %arg3: memref<16x9xf32, #tpu.memory_space<vmem>>, %arg4: memref<3x4xf32, #tpu.memory_space<vmem>>, %arg5: memref<1x1xf32, #tpu.memory_space<smem>>, %arg6: memref<1x16x256xf32, #tpu.memory_space<vmem>>) attributes {dimension_semantics = [#tpu.dimension_semantics<parallel>], iteration_bounds = array<i64: 2>, scalar_prefetch = 0 : i64, scratch_operands = 0 : i64, tpu.core_type = #tpu.core_type<tc>, window_params = [{transform_indices = @transform_0, window_bounds = array<i64: 1, 16, 256>}, {pipeline_mode = #tpu.pipeline_mode<synchronous>, transform_indices = @transform_1, window_bounds = array<i64: 1, 16>}, {pipeline_mode = #tpu.pipeline_mode<synchronous>, transform_indices = @transform_2, window_bounds = array<i64: 16, 9>}, {pipeline_mode = #tpu.pipeline_mode<synchronous>, transform_indices = @transform_3, window_bounds = array<i64: 3, 4>}, {transform_indices = @transform_4, window_bounds = array<i64: 1, 1>}, {transform_indices = @transform_5, window_bounds = array<i64: 1, 16, 256>}]} {
    %c0 = arith.constant 0 : index
    %c0_0 = arith.constant 0 : index
    %c0_1 = arith.constant 0 : index
    %0 = vector.load %arg1[%c0, %c0_0, %c0_1] : memref<1x16x256xf32, #tpu.memory_space<vmem>>, vector<1x16x256xf32>
    %1 = vector.shape_cast %0 : vector<1x16x256xf32> to vector<16x256xf32>
    %c0_2 = arith.constant 0 : index
    %c0_3 = arith.constant 0 : index
    %2 = vector.load %arg2[%c0_2, %c0_3] : memref<1x16xf32, #tpu.memory_space<vmem>>, vector<1x16xf32>
    %cst = arith.constant dense<0.000000e+00> : vector<1x256xf32>
    %3 = tpu.matmul %2, %1, %cst {dimension_numbers = #tpu.dot_dimension_numbers<[1], [0], [0], [1], [0, 0, 1, 1], [], []>, precision = #tpu.contract_precision<fp32>} : vector<1x16xf32>, vector<16x256xf32>, vector<1x256xf32> -> vector<1x256xf32>
    %c0_4 = arith.constant 0 : index
    %c0_5 = arith.constant 0 : index
    %4 = memref.load %arg5[%c0_4, %c0_5] : memref<1x1xf32, #tpu.memory_space<smem>>
    %5 = vector.broadcast %4 : f32 to vector<1x256xf32>
    %6 = arith.addf %3, %5 : vector<1x256xf32>
    %cst_6 = arith.constant dense<0xFF800000> : vector<1xf32>
    %7 = vector.multi_reduction <maximumf>, %6, %cst_6 [1] : vector<1x256xf32> to vector<1xf32>
    %8 = vector.shape_cast %7 : vector<1xf32> to vector<1x1xf32>
    %9 = vector.broadcast %8 : vector<1x1xf32> to vector<1x256xf32>
    %10 = arith.subf %6, %9 : vector<1x256xf32>
    %11 = math.exp %10 : vector<1x256xf32>
    %cst_7 = arith.constant dense<0.000000e+00> : vector<1xf32>
    %12 = vector.multi_reduction <add>, %11, %cst_7 [1] : vector<1x256xf32> to vector<1xf32>
    %13 = vector.shape_cast %12 : vector<1xf32> to vector<1x1xf32>
    %14 = tpu.reciprocal %13 {approx = true} : vector<1x1xf32> -> vector<1x1xf32>
    %15 = arith.mulf %13, %14 : vector<1x1xf32>
    %cst_8 = arith.constant 2.000000e+00 : f32
    %16 = vector.broadcast %cst_8 : f32 to vector<1x1xf32>
    %17 = arith.subf %16, %15 : vector<1x1xf32>
    %18 = arith.mulf %14, %17 : vector<1x1xf32>
    %19 = arith.mulf %13, %18 : vector<1x1xf32>
    %cst_9 = arith.constant 2.000000e+00 : f32
    %20 = vector.broadcast %cst_9 : f32 to vector<1x1xf32>
    %21 = arith.subf %20, %19 : vector<1x1xf32>
    %22 = arith.mulf %18, %21 : vector<1x1xf32>
    %cst_10 = arith.constant dense<0.000000e+00> : vector<16x1xf32>
    %23 = tpu.matmul %1, %11, %cst_10 {dimension_numbers = #tpu.dot_dimension_numbers<[1], [1], [0], [0], [0, 0, 1, 0], [], []>, precision = #tpu.contract_precision<fp32>} : vector<16x256xf32>, vector<1x256xf32>, vector<16x1xf32> -> vector<16x1xf32>
    %24 = vector.broadcast %22 : vector<1x1xf32> to vector<16x1xf32>
    %25 = arith.mulf %23, %24 : vector<16x1xf32>
    %c0_11 = arith.constant 0 : index
    %c0_12 = arith.constant 0 : index
    %26 = vector.load %arg3[%c0_11, %c0_12] : memref<16x9xf32, #tpu.memory_space<vmem>>, vector<16x4xf32>
    %c0_13 = arith.constant 0 : index
    %c4 = arith.constant 4 : index
    %27 = vector.load %arg3[%c0_13, %c4] : memref<16x9xf32, #tpu.memory_space<vmem>>, vector<16x4xf32>
    %c0_14 = arith.constant 0 : index
    %c8 = arith.constant 8 : index
    %28 = vector.load %arg3[%c0_14, %c8] : memref<16x9xf32, #tpu.memory_space<vmem>>, vector<16x1xf32>
    %c0_15 = arith.constant 0 : index
    %c0_16 = arith.constant 0 : index
    %29 = vector.load %arg4[%c0_15, %c0_16] : memref<3x4xf32, #tpu.memory_space<vmem>>, vector<1x4xf32>
    %c1 = arith.constant 1 : index
    %c0_17 = arith.constant 0 : index
    %30 = vector.load %arg4[%c1, %c0_17] : memref<3x4xf32, #tpu.memory_space<vmem>>, vector<1x4xf32>
    %c2 = arith.constant 2 : index
    %c0_18 = arith.constant 0 : index
    %31 = vector.load %arg4[%c2, %c0_18] : memref<3x4xf32, #tpu.memory_space<vmem>>, vector<1x4xf32>
    %32 = vector.broadcast %25 : vector<16x1xf32> to vector<16x4xf32>
    %33 = arith.mulf %26, %32 : vector<16x4xf32>
    %cst_19 = arith.constant dense<0.000000e+00> : vector<4xf32>
    %34 = vector.multi_reduction <add>, %33, %cst_19 [0] : vector<16x4xf32> to vector<4xf32>
    %35 = vector.shape_cast %34 : vector<4xf32> to vector<1x4xf32>
    %36 = arith.addf %35, %29 : vector<1x4xf32>
    %37 = vector.shape_cast %36 : vector<1x4xf32> to vector<1x1x4xf32>
    %cst_20 = arith.constant dense<0.000000e+00> : vector<1xf32>
    %38 = vector.multi_reduction <add>, %37, %cst_20 [1, 2] : vector<1x1x4xf32> to vector<1xf32>
    %39 = vector.shape_cast %38 : vector<1xf32> to vector<1x1x1xf32>
    %40 = vector.extract %39[0, 0, 0] : f32 from vector<1x1x1xf32>
    %cst_21 = arith.constant 4.000000e+00 : f32
    %41 = arith.divf %40, %cst_21 : f32
    %42 = vector.broadcast %41 : f32 to vector<1x4xf32>
    %43 = arith.subf %36, %42 : vector<1x4xf32>
    %44 = vector.broadcast %41 : f32 to vector<1x4xf32>
    %45 = arith.subf %36, %44 : vector<1x4xf32>
    %46 = arith.mulf %43, %45 : vector<1x4xf32>
    %47 = vector.shape_cast %46 : vector<1x4xf32> to vector<1x1x4xf32>
    %cst_22 = arith.constant dense<0.000000e+00> : vector<1xf32>
    %48 = vector.multi_reduction <add>, %47, %cst_22 [1, 2] : vector<1x1x4xf32> to vector<1xf32>
    %49 = vector.shape_cast %48 : vector<1xf32> to vector<1x1x1xf32>
    %50 = vector.extract %49[0, 0, 0] : f32 from vector<1x1x1xf32>
    %cst_23 = arith.constant 4.000000e+00 : f32
    %51 = arith.divf %50, %cst_23 : f32
    %52 = vector.broadcast %41 : f32 to vector<1x4xf32>
    %53 = arith.subf %36, %52 : vector<1x4xf32>
    %cst_24 = arith.constant 9.99999974E-6 : f32
    %54 = arith.addf %51, %cst_24 : f32
    %55 = math.rsqrt %54 : f32
    %56 = vector.broadcast %55 : f32 to vector<1x4xf32>
    %57 = arith.mulf %53, %56 : vector<1x4xf32>
    %58 = arith.mulf %57, %30 : vector<1x4xf32>
    %59 = arith.addf %58, %31 : vector<1x4xf32>
    %cst_25 = arith.constant 0.000000e+00 : f32
    %60 = vector.broadcast %cst_25 : f32 to vector<1x4xf32>
    %61 = arith.maximumf %59, %60 : vector<1x4xf32>
    %62 = vector.broadcast %61 : vector<1x4xf32> to vector<16x4xf32>
    %63 = arith.mulf %27, %62 : vector<16x4xf32>
    %cst_26 = arith.constant dense<0.000000e+00> : vector<16xf32>
    %64 = vector.multi_reduction <add>, %63, %cst_26 [1] : vector<16x4xf32> to vector<16xf32>
    %65 = vector.shape_cast %64 : vector<16xf32> to vector<16x1xf32>
    %66 = arith.addf %65, %28 : vector<16x1xf32>
    %67 = arith.negf %66 : vector<16x1xf32>
    %68 = math.exp %67 : vector<16x1xf32>
    %cst_27 = arith.constant 1.000000e+00 : f32
    %69 = vector.broadcast %cst_27 : f32 to vector<16x1xf32>
    %70 = arith.addf %69, %68 : vector<16x1xf32>
    %71 = arith.divf %69, %70 : vector<16x1xf32>
    %72 = vector.broadcast %71 : vector<16x1xf32> to vector<16x256xf32>
    %73 = arith.mulf %1, %72 : vector<16x256xf32>
    %c0_28 = arith.constant 0 : index
    %c0_29 = arith.constant 0 : index
    %c0_30 = arith.constant 0 : index
    %74 = vector.load %arg6[%c0_28, %c0_29, %c0_30] : memref<1x16x256xf32, #tpu.memory_space<vmem>>, vector<1x16x256xf32>
    %75 = vector.shape_cast %74 : vector<1x16x256xf32> to vector<16x256xf32>
    %76 = vector.shape_cast %73 : vector<16x256xf32> to vector<1x16x256xf32>
    tpu.vector_store %arg6[%c0_28, %c0_29, %c0_30], %76 {strides = array<i32>} : memref<1x16x256xf32, #tpu.memory_space<vmem>>, vector<1x16x256xf32>,
    return
  }
  func.func @transform_0(%arg0: i32) -> (i32, i32, i32) {
    %c0_i32 = arith.constant 0 : i32
    %c0_i32_0 = arith.constant 0 : i32
    %c0_i32_1 = arith.constant 0 : i32
    return %arg0, %c0_i32, %c0_i32_0 : i32, i32, i32
  }
  func.func @transform_1(%arg0: i32) -> (i32, i32) {
    %c0_i32 = arith.constant 0 : i32
    %c0_i32_0 = arith.constant 0 : i32
    %c0_i32_1 = arith.constant 0 : i32
    return %c0_i32, %c0_i32_0 : i32, i32
  }
  func.func @transform_2(%arg0: i32) -> (i32, i32) {
    %c0_i32 = arith.constant 0 : i32
    %c0_i32_0 = arith.constant 0 : i32
    %c0_i32_1 = arith.constant 0 : i32
    return %c0_i32, %c0_i32_0 : i32, i32
  }
  func.func @transform_3(%arg0: i32) -> (i32, i32) {
    %c0_i32 = arith.constant 0 : i32
    %c0_i32_0 = arith.constant 0 : i32
    %c0_i32_1 = arith.constant 0 : i32
    return %c0_i32, %c0_i32_0 : i32, i32
  }
  func.func @transform_4(%arg0: i32) -> (i32, i32) {
    %c0_i32 = arith.constant 0 : i32
    %c0_i32_0 = arith.constant 0 : i32
    %c0_i32_1 = arith.constant 0 : i32
    return %c0_i32, %c0_i32_0 : i32, i32
  }
  func.func @transform_5(%arg0: i32) -> (i32, i32, i32) {
    %c0_i32 = arith.constant 0 : i32
    %c0_i32_0 = arith.constant 0 : i32
    %c0_i32_1 = arith.constant 0 : i32
    return %arg0, %c0_i32, %c0_i32_0 : i32, i32, i32
  }
}

</mosaic_0001>

<llo_original>
// kernel: global_context_block.1
$region0: #{global_context_block.1}
  #allocation0 [shape = 'u32[]', space=smem, size = 0x4, offset = 0x4, fixed_abs, tag = 'smem constant byte address 0x4 - core index']
  #allocation1 [shape = 'u32[72,128]{1,0:T(1,128)}', space=vmem, size = 0x9000, scoped, tag = 'internal scratch']
  #allocation2 [shape = 'f32[1,1]{1,0:T(1,128)S(6)}', space=smem, size = 0x200, scoped, tag = 'scoped memory for global_context_block.1']
  %s0 = inlined_call_operand.vmem [shape: f32[2,16,256], index: 0, kind: input, shape index: {}]
  %s1 = inlined_call_operand.vmem [shape: f32[1,16], index: 1, kind: input, shape index: {}]
  %s2 = inlined_call_operand.vmem [shape: f32[16,9], index: 2, kind: input, shape index: {}]
  %s3 = inlined_call_operand.vmem [shape: f32[3,4], index: 3, kind: input, shape index: {}]
  %s4 = inlined_call_operand.<no memory space> [shape: f32[1,1], index: 4, kind: input, shape index: {}]
  %s5 = inlined_call_operand.vmem [shape: f32[2,16,256], index: 5, kind: output, shape index: {}]
  %s6 = sld [smem:[#allocation0]]
  $region53: #{global_context_block.1} parent=0
    _
  %s8 = ssub.s32 1, %s6
  %s9 = scalar_select 0, %s8, %s6
  %10 = sst [smem:[#allocation2]] %s4
  loop: start=0, step=1, limit=4
  $region2: #{global_context_block.1} parent=0 // loop_pre_header
    _
  $region3: #{global_context_block.1} parent=0 // loop_header
    %s12 = sphi 0, %s16
    %p13 = scmp.ge.s32.totalorder %s12, 4
    %s22 = sphi 0, %s24
    %s25 = sphi 0, %s22
    %s26 = sphi 0, %s25
    %s42 = sphi 0, %s26
    %s46 = sphi 0, %s46
    %s48 = sphi 0, %s46
    %s49 = sphi 0, %s48
    %s63 = sphi 0, %s49
    %s67 = sphi 0, %s67
    %s69 = sphi 0, %s67
    %s70 = sphi 0, %s69
    %s84 = sphi 0, %s70
    %s88 = sphi 0, %s88
    %s90 = sphi 0, %s88
    %s91 = sphi 0, %s90
    %s105 = sphi 0, %s91
    %s109 = sphi 0, %s109
    %s111 = sphi 0, %s109
    %s112 = sphi 0, %s111
    %s126 = sphi 0, %s112
    %s132 = sphi 0, %s134
    %s135 = sphi 0, %s132
    %s136 = sphi 0, %s135
    %s152 = sphi 0, %s136
  $region4: #{global_context_block.1} parent=0 // loop_header_branch
    %15 = sbr.rel (%p13) target = $region8
  $region5: #{global_context_block.1} parent=0 // loop_body
    %s17 = ssub.s32 %s12, 1
    %s18 = ssub.s32 %s12, 2
    %s19 = sadd.s32 %s12, 1
    %s20 = ssub.s32 %s12, %s19
    %p21 = scmp.eq.s32.totalorder %s20, 0
    %s23 = sadd.s32 %s22, 1
    %s24 = scalar_select %p21, %s22, %s23
    %p27 = pneg %p21
    %p28 = scmp.eq.s32.totalorder %s12, 1
    %p29 = por %p27, %p28
    %p30 = scmp.ne.s32.totalorder %s22, %s25
    %p31 = scmp.eq.s32.totalorder %s12, 0
    %p32 = por %p30, %p31
    %p33 = scmp.ne.s32.totalorder %s22, %s25
    %p34 = scmp.eq.s32.totalorder %s17, 1
    %p35 = por %p33, %p34
    %p36 = scmp.ne.s32.totalorder %s25, %s26
    %p37 = scmp.eq.s32.totalorder %s17, 0
    %p38 = por %p36, %p37
    %p39 = scmp.ne.s32.totalorder %s25, %s26
    %p40 = scmp.eq.s32.totalorder %s18, 1
    %p41 = por %p39, %p40
    %p43 = scmp.ne.s32.totalorder %s26, %s42
    %p44 = scmp.eq.s32.totalorder %s18, 0
    %p45 = por %p43, %p44
    %s47 = sadd.s32 %s46, 1
    %p50 = scmp.eq.s32.totalorder %s12, 1
    %p51 = scmp.ne.s32.totalorder %s46, %s48
    %p52 = scmp.eq.s32.totalorder %s12, 0
    %p53 = por %p51, %p52
    %p54 = scmp.ne.s32.totalorder %s46, %s48
    %p55 = scmp.eq.s32.totalorder %s17, 1
    %p56 = por %p54, %p55
    %p57 = scmp.ne.s32.totalorder %s48, %s49
    %p58 = scmp.eq.s32.totalorder %s17, 0
    %p59 = por %p57, %p58
    %p60 = scmp.ne.s32.totalorder %s48, %s49
    %p61 = scmp.eq.s32.totalorder %s18, 1
    %p62 = por %p60, %p61
    %p64 = scmp.ne.s32.totalorder %s49, %s63
    %p65 = scmp.eq.s32.totalorder %s18, 0
    %p66 = por %p64, %p65
    %s68 = sadd.s32 %s67, 1
    %p71 = scmp.eq.s32.totalorder %s12, 1
    %p72 = scmp.ne.s32.totalorder %s67, %s69
    %p73 = scmp.eq.s32.totalorder %s12, 0
    %p74 = por %p72, %p73
    %p75 = scmp.ne.s32.totalorder %s67, %s69
    %p76 = scmp.eq.s32.totalorder %s17, 1
    %p77 = por %p75, %p76
    %p78 = scmp.ne.s32.totalorder %s69, %s70
    %p79 = scmp.eq.s32.totalorder %s17, 0
    %p80 = por %p78, %p79
    %p81 = scmp.ne.s32.totalorder %s69, %s70
    %p82 = scmp.eq.s32.totalorder %s18, 1
    %p83 = por %p81, %p82
    %p85 = scmp.ne.s32.totalorder %s70, %s84
    %p86 = scmp.eq.s32.totalorder %s18, 0
    %p87 = por %p85, %p86
    %s89 = sadd.s32 %s88, 1
    %p92 = scmp.eq.s32.totalorder %s12, 1
    %p93 = scmp.ne.s32.totalorder %s88, %s90
    %p94 = scmp.eq.s32.totalorder %s12, 0
    %p95 = por %p93, %p94
    %p96 = scmp.ne.s32.totalorder %s88, %s90
    %p97 = scmp.eq.s32.totalorder %s17, 1
    %p98 = por %p96, %p97
    %p99 = scmp.ne.s32.totalorder %s90, %s91
    %p100 = scmp.eq.s32.totalorder %s17, 0
    %p101 = por %p99, %p100
    %p102 = scmp.ne.s32.totalorder %s90, %s91
    %p103 = scmp.eq.s32.totalorder %s18, 1
    %p104 = por %p102, %p103
    %p106 = scmp.ne.s32.totalorder %s91, %s105
    %p107 = scmp.eq.s32.totalorder %s18, 0
    %p108 = por %p106, %p107
    %s110 = sadd.s32 %s109, 1
    %p113 = scmp.eq.s32.totalorder %s12, 1
    %p114 = scmp.ne.s32.totalorder %s109, %s111
    %p115 = scmp.eq.s32.totalorder %s12, 0
    %p116 = por %p114, %p115
    %p117 = scmp.ne.s32.totalorder %s109, %s111
    %p118 = scmp.eq.s32.totalorder %s17, 1
    %p119 = por %p117, %p118
    %p120 = scmp.ne.s32.totalorder %s111, %s112
    %p121 = scmp.eq.s32.totalorder %s17, 0
    %p122 = por %p120, %p121
    %p123 = scmp.ne.s32.totalorder %s111, %s112
    %p124 = scmp.eq.s32.totalorder %s18, 1
    %p125 = por %p123, %p124
    %p127 = scmp.ne.s32.totalorder %s112, %s126
    %p128 = scmp.eq.s32.totalorder %s18, 0
    %p129 = por %p127, %p128
    %s130 = ssub.s32 %s12, %s19
    %p131 = scmp.eq.s32.totalorder %s130, 0
    %s133 = sadd.s32 %s132, 1
    %s134 = scalar_select %p131, %s132, %s133
    %p137 = pneg %p131
    %p138 = scmp.eq.s32.totalorder %s12, 1
    %p139 = por %p137, %p138
    %p140 = scmp.ne.s32.totalorder %s132, %s135
    %p141 = scmp.eq.s32.totalorder %s12, 0
    %p142 = por %p140, %p141
    %p143 = scmp.ne.s32.totalorder %s132, %s135
    %p144 = scmp.eq.s32.totalorder %s17, 1
    %p145 = por %p143, %p144
    %p146 = scmp.ne.s32.totalorder %s135, %s136
    %p147 = scmp.eq.s32.totalorder %s17, 0
    %p148 = por %p146, %p147
    %p149 = scmp.ne.s32.totalorder %s135, %s136
    %p150 = scmp.eq.s32.totalorder %s18, 1
    %p151 = por %p149, %p150
    %p153 = scmp.ne.s32.totalorder %s136, %s152
    %p154 = scmp.eq.s32.totalorder %s18, 0
    %p155 = por %p153, %p154
    %p156 = scmp.le.s32.totalorder 1, %s12
    %p157 = scmp.lt.s32.totalorder %s12, 3
    %p158 = pnand %p156, %p157
    %p159 = pneg %p158
    // Predicated region
    $region9: #{global_context_block.1} parent=5 // pred_check
      _
    $region10: #{global_context_block.1} parent=5 // pred_check_branch
      %161 = sbr.rel (%p158) target = $region12
    $region11: #{global_context_block.1} parent=5 // pred_region
      %s162 = ssub.s32 %s12, 1
      // Predicated region
      $region13: #{global_context_block.1} parent=11 // pred_check
        %p163 = pneg %p59
      $region14: #{global_context_block.1} parent=11 // pred_check_branch
        %165 = sbr.rel (%p163) target = $region16
      $region15: #{global_context_block.1} parent=11 // pred_region
        _
      $region16: #{global_context_block.1} parent=11 // pred_fallthru
        _
      // Predicated region
      $region17: #{global_context_block.1} parent=11 // pred_check
        %p166 = pneg %p80
      $region18: #{global_context_block.1} parent=11 // pred_check_branch
        %168 = sbr.rel (%p166) target = $region20
      $region19: #{global_context_block.1} parent=11 // pred_region
        _
      $region20: #{global_context_block.1} parent=11 // pred_fallthru
        _
      // Predicated region
      $region21: #{global_context_block.1} parent=11 // pred_check
        %p169 = pneg %p101
      $region22: #{global_context_block.1} parent=11 // pred_check_branch
        %171 = sbr.rel (%p169) target = $region24
      $region23: #{global_context_block.1} parent=11 // pred_region
        _
      $region24: #{global_context_block.1} parent=11 // pred_fallthru
        _
      // Predicated region
      $region25: #{global_context_block.1} parent=11 // pred_check
        %p172 = pneg %p122
      $region26: #{global_context_block.1} parent=11 // pred_check_branch
        %174 = sbr.rel (%p172) target = $region28
      $region27: #{global_context_block.1} parent=11 // pred_region
        _
      $region28: #{global_context_block.1} parent=11 // pred_fallthru
        _
    $region12: #{global_context_block.1} parent=5 // pred_fallthru
      _
    %p175 = scmp.lt.s32.totalorder %s12, 2
    // Predicated region
    $region29: #{global_context_block.1} parent=5 // pred_check
      %p176 = pneg %p175
    $region30: #{global_context_block.1} parent=5 // pred_check_branch
      %178 = sbr.rel (%p176) target = $region32
    $region31: #{global_context_block.1} parent=5 // pred_region
      // Predicated region
      $region33: #{global_context_block.1} parent=31 // pred_check
        %p179 = pneg %p32
      $region34: #{global_context_block.1} parent=31 // pred_check_branch
        %181 = sbr.rel (%p179) target = $region36
      $region35: #{global_context_block.1} parent=31 // pred_region
        %p182 = scmp.lt.s32.totalorder %s12, 1
        %s183 = scalar_select %p182, %s12, 1
        %s184 = smul.addr %s183, 4
        %s185 = smul.addr %s184, 8
        %s186 = scalar_lea.vmem %s0, %s185
      $region36: #{global_context_block.1} parent=31 // pred_fallthru
        _
    $region32: #{global_context_block.1} parent=5 // pred_fallthru
      _
    %p187 = scmp.le.s32.totalorder 1, %s12
    %p188 = scmp.lt.s32.totalorder %s12, 3
    %p189 = pnand %p187, %p188
    %p190 = pneg %p189
    // Predicated region
    $region37: #{global_context_block.1} parent=5 // pred_check
      _
    $region38: #{global_context_block.1} parent=5 // pred_check_branch
      %192 = sbr.rel (%p189) target = $region40
    $region39: #{global_context_block.1} parent=5 // pred_region
      %s193 = ssub.s32 %s12, 1
      %p194 = scmp.lt.s32.totalorder %s17, 1
      %s195 = scalar_select %p194, %s17, 1
      %s196 = smul.addr %s195, 4
      %s197 = smul.addr %s196, 8
      %s198 = scalar_lea.vmem %s0, %s197
      %p199 = pneg %p38
      %p200 = pneg %p35
      %p201 = pneg %p59
      %p202 = pneg %p56
      %p203 = pneg %p80
      %p204 = pneg %p77
      %p205 = pneg %p101
      %p206 = pneg %p98
      %p207 = pneg %p122
      %p208 = pneg %p119
      %p209 = pneg %p148
      %p210 = pneg %p145
      %p211 = scmp.lt.s32.totalorder %s17, 1
      %s212 = scalar_select %p211, %s17, 1
      %s213 = smul.addr %s212, 4
      %s214 = smul.addr %s213, 8
      %s215 = scalar_lea.vmem %s5, %s214
      %p216 = scmp.lt.s32.totalorder %s17, 1
      %s217 = scalar_select %p216, %s17, 1
      %s218 = smul.addr %s217, 4
      %s219 = smul.addr %s218, 8
      %s220 = scalar_lea.vmem %s0, %s219
      %p221 = scmp.lt.s32.totalorder %s17, 1
      %s222 = scalar_select %p221, %s17, 1
      %s223 = smul.addr %s222, 4
      %s224 = smul.addr %s223, 8
      %s225 = scalar_lea.vmem %s5, %s224
      %v226 = vld [vmem:[%s220] sm:$0xff]
      %v227 = vld [vmem:[%s220 + $0x8] sm:$0xff]
      %v228 = vld [vmem:[%s220 + $0x10] sm:$0xff]
      %v229 = vld [vmem:[%s220 + $0x18] sm:$0xff]
      %v230 = vld [vmem:[%s1] sm:$0x1]
      %s231 = sld [smem:[#allocation2]]
      %v232 = vstv %s231
      %vm233 = vcmask 130048
      %v235 = vsel %vm233, %v230, 0
      %237 = vmatpush.msra.mxu0 0.0
      %238 = vmatpush.msra.mxu0 0.0
      %239 = vmatpush.msra.mxu0 0.0
      %240 = vmatpush.msra.mxu0 0.0
      %241 = vmatpush.msra.mxu0 0.0
      %242 = vmatpush.msra.mxu0 0.0
      %243 = vmatpush.msra.mxu0 0.0
      %244 = vmatpush.msra.mxu0 0.0
      %245 = vmatpush.msra.mxu0 0.0
      %246 = vmatpush.msra.mxu0 0.0
      %247 = vmatpush.msra.mxu0 0.0
      %248 = vmatpush.msra.mxu0 0.0
      %249 = vmatpush.msra.mxu0 0.0
      %250 = vmatpush.msra.mxu0 0.0
      %v251 = vand.u32 %v228, 4294901760
      %252 = vmatpush.msra.mxu0 %v251
      %v253 = vand.u32 %v226, 4294901760
      %254 = vmatpush.msra.mxu0 %v253
      %v255 = vand.u32 %v235, 4294901760
      %v256 = vsub.f32 %v235, %v255
      %v257 = vand.u32 %v256, 4294901760
      %v258 = vsub.f32 %v256, %v257
      %v259 = vand.u32 %v258, 4294901760
      %260 = vmatmul.f32.gmra.mxu0 %v259
      %v261 = vpop.f32.mrf.mxu0
      %v262 = vadd.f32 %v232, %v261
      %263 = vdwg.mxu0
      %264 = vmatpush.msra.mxu0 0.0
      %265 = vmatpush.msra.mxu0 0.0
      %266 = vmatpush.msra.mxu0 0.0
      %267 = vmatpush.msra.mxu0 0.0
      %268 = vmatpush.msra.mxu0 0.0
      %269 = vmatpush.msra.mxu0 0.0
      %270 = vmatpush.msra.mxu0 0.0
      %271 = vmatpush.msra.mxu0 0.0
      %272 = vmatpush.msra.mxu0 0.0
      %273 = vmatpush.msra.mxu0 0.0
      %274 = vmatpush.msra.mxu0 0.0
      %275 = vmatpush.msra.mxu0 0.0
      %276 = vmatpush.msra.mxu0 0.0
      %277 = vmatpush.msra.mxu0 0.0
      %v278 = vand.u32 %v228, 4294901760
      %v279 = vsub.f32 %v228, %v278
      %v280 = vand.u32 %v279, 4294901760
      %v281 = vsub.f32 %v279, %v280
      %v282 = vand.u32 %v281, 4294901760
      %283 = vmatpush.msra.mxu0 %v282
      %v284 = vand.u32 %v226, 4294901760
      %v285 = vsub.f32 %v226, %v284
      %v286 = vand.u32 %v285, 4294901760
      %v287 = vsub.f32 %v285, %v286
      %v288 = vand.u32 %v287, 4294901760
      %289 = vmatpush.msra.mxu0 %v288
      %v290 = vand.u32 %v235, 4294901760
      %291 = vmatmul.f32.gmra.mxu0 %v290
      %v292 = vpop.f32.mrf.mxu0
      %v293 = vadd.f32 %v262, %v292
      %294 = vdwg.mxu0
      %295 = vmatpush.msra.mxu0 0.0
      %296 = vmatpush.msra.mxu0 0.0
      %297 = vmatpush.msra.mxu0 0.0
      %298 = vmatpush.msra.mxu0 0.0
      %299 = vmatpush.msra.mxu0 0.0
      %300 = vmatpush.msra.mxu0 0.0
      %301 = vmatpush.msra.mxu0 0.0
      %302 = vmatpush.msra.mxu0 0.0
      %303 = vmatpush.msra.mxu0 0.0
      %304 = vmatpush.msra.mxu0 0.0
      %305 = vmatpush.msra.mxu0 0.0
      %306 = vmatpush.msra.mxu0 0.0
      %307 = vmatpush.msra.mxu0 0.0
      %308 = vmatpush.msra.mxu0 0.0
      %v309 = vand.u32 %v228, 4294901760
      %v310 = vsub.f32 %v228, %v309
      %311 = vmatpush.msra.mxu0 %v310
      %v312 = vand.u32 %v226, 4294901760
      %v313 = vsub.f32 %v226, %v312
      %314 = vmatpush.msra.mxu0 %v313
      %v315 = vand.u32 %v235, 4294901760
      %v316 = vsub.f32 %v235, %v315
      %317 = vmatmul.f32.gmra.mxu0 %v316
      %v318 = vpop.f32.mrf.mxu0
      %v319 = vadd.f32 %v293, %v318
      %320 = vdwg.mxu0
      %321 = vmatpush.msra.mxu0 0.0
      %322 = vmatpush.msra.mxu0 0.0
      %323 = vmatpush.msra.mxu0 0.0
      %324 = vmatpush.msra.mxu0 0.0
      %325 = vmatpush.msra.mxu0 0.0
      %326 = vmatpush.msra.mxu0 0.0
      %327 = vmatpush.msra.mxu0 0.0
      %328 = vmatpush.msra.mxu0 0.0
      %329 = vmatpush.msra.mxu0 0.0
      %330 = vmatpush.msra.mxu0 0.0
      %331 = vmatpush.msra.mxu0 0.0
      %332 = vmatpush.msra.mxu0 0.0
      %333 = vmatpush.msra.mxu0 0.0
      %334 = vmatpush.msra.mxu0 0.0
      %v335 = vand.u32 %v228, 4294901760
      %336 = vmatpush.msra.mxu0 %v335
      %v337 = vand.u32 %v226, 4294901760
      %338 = vmatpush.msra.mxu0 %v337
      %v339 = vand.u32 %v235, 4294901760
      %v340 = vsub.f32 %v235, %v339
      %v341 = vand.u32 %v340, 4294901760
      %342 = vmatmul.f32.gmra.mxu0 %v341
      %v343 = vpop.f32.mrf.mxu0
      %v344 = vadd.f32 %v319, %v343
      %345 = vdwg.mxu0
      %346 = vmatpush.msra.mxu0 0.0
      %347 = vmatpush.msra.mxu0 0.0
      %348 = vmatpush.msra.mxu0 0.0
      %349 = vmatpush.msra.mxu0 0.0
      %350 = vmatpush.msra.mxu0 0.0
      %351 = vmatpush.msra.mxu0 0.0
      %352 = vmatpush.msra.mxu0 0.0
      %353 = vmatpush.msra.mxu0 0.0
      %354 = vmatpush.msra.mxu0 0.0
      %355 = vmatpush.msra.mxu0 0.0
      %356 = vmatpush.msra.mxu0 0.0
      %357 = vmatpush.msra.mxu0 0.0
      %358 = vmatpush.msra.mxu0 0.0
      %359 = vmatpush.msra.mxu0 0.0
      %v360 = vand.u32 %v228, 4294901760
      %v361 = vsub.f32 %v228, %v360
      %v362 = vand.u32 %v361, 4294901760
      %363 = vmatpush.msra.mxu0 %v362
      %v364 = vand.u32 %v226, 4294901760
      %v365 = vsub.f32 %v226, %v364
      %v366 = vand.u32 %v365, 4294901760
      %367 = vmatpush.msra.mxu0 %v366
      %v368 = vand.u32 %v235, 4294901760
      %369 = vmatmul.f32.gmra.mxu0 %v368
      %v370 = vpop.f32.mrf.mxu0
      %v371 = vadd.f32 %v344, %v370
      %372 = vdwg.mxu0
      %373 = vmatpush.msra.mxu0 0.0
      %374 = vmatpush.msra.mxu0 0.0
      %375 = vmatpush.msra.mxu0 0.0
      %376 = vmatpush.msra.mxu0 0.0
      %377 = vmatpush.msra.mxu0 0.0
      %378 = vmatpush.msra.mxu0 0.0
      %379 = vmatpush.msra.mxu0 0.0
      %380 = vmatpush.msra.mxu0 0.0
      %381 = vmatpush.msra.mxu0 0.0
      %382 = vmatpush.msra.mxu0 0.0
      %383 = vmatpush.msra.mxu0 0.0
      %384 = vmatpush.msra.mxu0 0.0
      %385 = vmatpush.msra.mxu0 0.0
      %386 = vmatpush.msra.mxu0 0.0
      %v387 = vand.u32 %v228, 4294901760
      %388 = vmatpush.msra.mxu0 %v387
      %v389 = vand.u32 %v226, 4294901760
      %390 = vmatpush.msra.mxu0 %v389
      %v391 = vand.u32 %v235, 4294901760
      %392 = vmatmul.f32.gmra.mxu0 %v391
      %v393 = vpop.f32.mrf.mxu0
      %v394 = vadd.f32 %v371, %v393
      %395 = vdwg.mxu0
      %396 = vmatpush.msra.mxu0 0.0
      %397 = vmatpush.msra.mxu0 0.0
      %398 = vmatpush.msra.mxu0 0.0
      %399 = vmatpush.msra.mxu0 0.0
      %400 = vmatpush.msra.mxu0 0.0
      %401 = vmatpush.msra.mxu0 0.0
      %402 = vmatpush.msra.mxu0 0.0
      %403 = vmatpush.msra.mxu0 0.0
      %404 = vmatpush.msra.mxu0 0.0
      %405 = vmatpush.msra.mxu0 0.0
      %406 = vmatpush.msra.mxu0 0.0
      %407 = vmatpush.msra.mxu0 0.0
      %408 = vmatpush.msra.mxu0 0.0
      %409 = vmatpush.msra.mxu0 0.0
      %v410 = vand.u32 %v229, 4294901760
      %411 = vmatpush.msra.mxu0 %v410
      %v412 = vand.u32 %v227, 4294901760
      %413 = vmatpush.msra.mxu0 %v412
      %v414 = vand.u32 %v235, 4294901760
      %v415 = vsub.f32 %v235, %v414
      %v416 = vand.u32 %v415, 4294901760
      %v417 = vsub.f32 %v415, %v416
      %v418 = vand.u32 %v417, 4294901760
      %419 = vmatmul.f32.gmra.mxu0 %v418
      %v420 = vpop.f32.mrf.mxu0
      %v421 = vadd.f32 %v232, %v420
      %422 = vdwg.mxu0
      %423 = vmatpush.msra.mxu0 0.0
      %424 = vmatpush.msra.mxu0 0.0
      %425 = vmatpush.msra.mxu0 0.0
      %426 = vmatpush.msra.mxu0 0.0
      %427 = vmatpush.msra.mxu0 0.0
      %428 = vmatpush.msra.mxu0 0.0
      %429 = vmatpush.msra.mxu0 0.0
      %430 = vmatpush.msra.mxu0 0.0
      %431 = vmatpush.msra.mxu0 0.0
      %432 = vmatpush.msra.mxu0 0.0
      %433 = vmatpush.msra.mxu0 0.0
      %434 = vmatpush.msra.mxu0 0.0
      %435 = vmatpush.msra.mxu0 0.0
      %436 = vmatpush.msra.mxu0 0.0
      %v437 = vand.u32 %v229, 4294901760
      %v438 = vsub.f32 %v229, %v437
      %v439 = vand.u32 %v438, 4294901760
      %v440 = vsub.f32 %v438, %v439
      %v441 = vand.u32 %v440, 4294901760
      %442 = vmatpush.msra.mxu0 %v441
      %v443 = vand.u32 %v227, 4294901760
      %v444 = vsub.f32 %v227, %v443
      %v445 = vand.u32 %v444, 4294901760
      %v446 = vsub.f32 %v444, %v445
      %v447 = vand.u32 %v446, 4294901760
      %448 = vmatpush.msra.mxu0 %v447
      %v449 = vand.u32 %v235, 4294901760
      %450 = vmatmul.f32.gmra.mxu0 %v449
      %v451 = vpop.f32.mrf.mxu0
      %v452 = vadd.f32 %v421, %v451
      %453 = vdwg.mxu0
      %454 = vmatpush.msra.mxu0 0.0
      %455 = vmatpush.msra.mxu0 0.0
      %456 = vmatpush.msra.mxu0 0.0
      %457 = vmatpush.msra.mxu0 0.0
      %458 = vmatpush.msra.mxu0 0.0
      %459 = vmatpush.msra.mxu0 0.0
      %460 = vmatpush.msra.mxu0 0.0
      %461 = vmatpush.msra.mxu0 0.0
      %462 = vmatpush.msra.mxu0 0.0
      %463 = vmatpush.msra.mxu0 0.0
      %464 = vmatpush.msra.mxu0 0.0
      %465 = vmatpush.msra.mxu0 0.0
      %466 = vmatpush.msra.mxu0 0.0
      %467 = vmatpush.msra.mxu0 0.0
      %v468 = vand.u32 %v229, 4294901760
      %v469 = vsub.f32 %v229, %v468
      %470 = vmatpush.msra.mxu0 %v469
      %v471 = vand.u32 %v227, 4294901760
      %v472 = vsub.f32 %v227, %v471
      %473 = vmatpush.msra.mxu0 %v472
      %v474 = vand.u32 %v235, 4294901760
      %v475 = vsub.f32 %v235, %v474
      %476 = vmatmul.f32.gmra.mxu0 %v475
      %v477 = vpop.f32.mrf.mxu0
      %v478 = vadd.f32 %v452, %v477
      %479 = vdwg.mxu0
      %480 = vmatpush.msra.mxu0 0.0
      %481 = vmatpush.msra.mxu0 0.0
      %482 = vmatpush.msra.mxu0 0.0
      %483 = vmatpush.msra.mxu0 0.0
      %484 = vmatpush.msra.mxu0 0.0
      %485 = vmatpush.msra.mxu0 0.0
      %486 = vmatpush.msra.mxu0 0.0
      %487 = vmatpush.msra.mxu0 0.0
      %488 = vmatpush.msra.mxu0 0.0
      %489 = vmatpush.msra.mxu0 0.0
      %490 = vmatpush.msra.mxu0 0.0
      %491 = vmatpush.msra.mxu0 0.0
      %492 = vmatpush.msra.mxu0 0.0
      %493 = vmatpush.msra.mxu0 0.0
      %v494 = vand.u32 %v229, 4294901760
      %495 = vmatpush.msra.mxu0 %v494
      %v496 = vand.u32 %v227, 4294901760
      %497 = vmatpush.msra.mxu0 %v496
      %v498 = vand.u32 %v235, 4294901760
      %v499 = vsub.f32 %v235, %v498
      %v500 = vand.u32 %v499, 4294901760
      %501 = vmatmul.f32.gmra.mxu0 %v500
      %v502 = vpop.f32.mrf.mxu0
      %v503 = vadd.f32 %v478, %v502
      %504 = vdwg.mxu0
      %505 = vmatpush.msra.mxu0 0.0
      %506 = vmatpush.msra.mxu0 0.0
      %507 = vmatpush.msra.mxu0 0.0
      %508 = vmatpush.msra.mxu0 0.0
      %509 = vmatpush.msra.mxu0 0.0
      %510 = vmatpush.msra.mxu0 0.0
      %511 = vmatpush.msra.mxu0 0.0
      %512 = vmatpush.msra.mxu0 0.0
      %513 = vmatpush.msra.mxu0 0.0
      %514 = vmatpush.msra.mxu0 0.0
      %515 = vmatpush.msra.mxu0 0.0
      %516 = vmatpush.msra.mxu0 0.0
      %517 = vmatpush.msra.mxu0 0.0
      %518 = vmatpush.msra.mxu0 0.0
      %v519 = vand.u32 %v229, 4294901760
      %v520 = vsub.f32 %v229, %v519
      %v521 = vand.u32 %v520, 4294901760
      %522 = vmatpush.msra.mxu0 %v521
      %v523 = vand.u32 %v227, 4294901760
      %v524 = vsub.f32 %v227, %v523
      %v525 = vand.u32 %v524, 4294901760
      %526 = vmatpush.msra.mxu0 %v525
      %v527 = vand.u32 %v235, 4294901760
      %528 = vmatmul.f32.gmra.mxu0 %v527
      %v529 = vpop.f32.mrf.mxu0
      %v530 = vadd.f32 %v503, %v529
      %531 = vdwg.mxu0
      %532 = vmatpush.msra.mxu0 0.0
      %533 = vmatpush.msra.mxu0 0.0
      %534 = vmatpush.msra.mxu0 0.0
      %535 = vmatpush.msra.mxu0 0.0
      %536 = vmatpush.msra.mxu0 0.0
      %537 = vmatpush.msra.mxu0 0.0
      %538 = vmatpush.msra.mxu0 0.0
      %539 = vmatpush.msra.mxu0 0.0
      %540 = vmatpush.msra.mxu0 0.0
      %541 = vmatpush.msra.mxu0 0.0
      %542 = vmatpush.msra.mxu0 0.0
      %543 = vmatpush.msra.mxu0 0.0
      %544 = vmatpush.msra.mxu0 0.0
      %545 = vmatpush.msra.mxu0 0.0
      %v546 = vand.u32 %v229, 4294901760
      %547 = vmatpush.msra.mxu0 %v546
      %v548 = vand.u32 %v227, 4294901760
      %549 = vmatpush.msra.mxu0 %v548
      %v550 = vand.u32 %v235, 4294901760
      %551 = vmatmul.f32.gmra.mxu0 %v550
      %v552 = vpop.f32.mrf.mxu0
      %v553 = vadd.f32 %v530, %v552
      %554 = vdwg.mxu0
      %vm555 = vcmask 1040384
      %v556 = vsel %vm555, %v394, -inf
      %v557 = vsel %vm555, %v553, -inf
      %v558 = vmax.f32 %v556, %v557
      %559 = vmax.xlane.f32.xlu0 %v558
      %v560 = vpop.xlane.xlu0 %559
      %v561 = vsub.f32 %v394, %v560
      %v562 = vsub.f32 %v553, %v560
      %v563 = vmul.f32 %v561, 1.442695
      %v564 = vpow.pop %v563
      %v565 = vmul.f32 %v562, 1.442695
      %v566 = vpow.pop %v565
      %v567 = vsel %vm555, %v564, 0.0
      %v568 = vsel %vm555, %v566, 0.0
      %v569 = vadd.f32 %v567, %v568
      %570 = vadd.xlane.f32.xlu0 %v569
      %v571 = vpop.xlane.xlu0 %570
      %v572 = vrcp.pop %v571
      %v573 = vmul.f32 %v571, %v572
      %v574 = vsub.f32 2.0, %v573
      %v575 = vmul.f32 %v572, %v574
      %v576 = vmul.f32 %v571, %v575
      %v577 = vsub.f32 2.0, %v576
      %v578 = vmul.f32 %v575, %v577
      %v579 = vperm.slane %v564, 0
      %v580 = vperm.slane %v566, 0
      %v581 = vmul.f32 %v226, %v579
      %v582 = vmul.f32 %v227, %v580
      %v583 = vmul.f32 %v228, %v579
      %v584 = vmul.f32 %v229, %v580
      %v585 = vadd.f32 %v581, %v582
      %586 = vadd.xlane.f32.xlu0 %v585
      %v587 = vpop.xlane.xlu0 %586
      %v588 = vadd.f32 %v583, %v584
      %589 = vadd.xlane.f32.xlu0 %v588
      %v590 = vpop.xlane.xlu0 %589
      %v591 = vperm.slane %v578, 0
      %v592 = vmul.f32 %v587, %v591
      %v593 = vmul.f32 %v590, %v591
      %v594 = vld [vmem:[%s2] sm:$0xff]
      %v595 = vld [vmem:[%s2 + $0x8] sm:$0xff]
      %v596 = vld [vmem:[%s3] sm:$0x1]
      %v597 = vld [vmem:[%s3 + $0x1] sm:$0x1]
      %v598 = vld [vmem:[%s3 + $0x2] sm:$0x1]
      %v599 = vmul.f32 %v594, %v592
      %v600 = vmul.f32 %v595, %v593
      %vm601 = vcmask 31744
      %v602 = vsel %vm601, %v599, 0.0
      %v603 = vsel %vm601, %v600, 0.0
      %v604 = vadd.f32 %v602, %v603
      %v605 = vrot.slane %v604, 4
      %v606 = vadd.f32 %v604, %v605
      %v607 = vrot.slane %v606, 2
      %v608 = vadd.f32 %v606, %v607
      %v609 = vrot.slane %v608, 1
      %v610 = vadd.f32 %v608, %v609
      %v611 = vadd.f32 %v610, %v596
      %vm612 = vcmask 24576
      %v613 = vsel %vm612, %v611, 0.0
      %614 = vadd.xlane.f32.xlu0 %v613
      %v615 = vpop.xlane.xlu0 %614
      %v616 = vrot.slane %v615, 4
      %v617 = vadd.f32 %v615, %v616
      %v618 = vrot.slane %v617, 2
      %v619 = vadd.f32 %v617, %v618
      %v620 = vrot.slane %v619, 1
      %v621 = vadd.f32 %v619, %v620
      %s622 = vtos %v621
      %v623 = vrcp.pop 4.0
      %v624 = vmul.f32 4.0, %v623
      %v625 = vsub.f32 1.0, %v624
      %v626 = vmul.f32 %v623, %v625
      %v627 = vadd.f32 %v623, %v626
      %vm628 = vweird.f32 %v623
      %v629 = vsel %vm628, %v623, %v627
      %s630 = vtos %v629
      %s631 = smul.f32 %s622, %s630
      %v632 = vstv %s631
      %v633 = vsub.f32 %v611, %v632
      %v634 = vmul.f32 %v633, %v633
      %v635 = vsel %vm612, %v634, 0.0
      %636 = vadd.xlane.f32.xlu0 %v635
      %v637 = vpop.xlane.xlu0 %636
      %v638 = vrot.slane %v637, 4
      %v639 = vadd.f32 %v637, %v638
      %v640 = vrot.slane %v639, 2
      %v641 = vadd.f32 %v639, %v640
      %v642 = vrot.slane %v641, 1
      %v643 = vadd.f32 %v641, %v642
      %s644 = vtos %v643
      %v645 = vrcp.pop 4.0
      %v646 = vmul.f32 4.0, %v645
      %v647 = vsub.f32 1.0, %v646
      %v648 = vmul.f32 %v645, %v647
      %v649 = vadd.f32 %v645, %v648
      %vm650 = vweird.f32 %v645
      %v651 = vsel %vm650, %v645, %v649
      %s652 = vtos %v651
      %s653 = smul.f32 %s644, %s652
      %s654 = sadd.f32 %s653, 1e-05
      %v655 = vstv %s654
      %v656 = vrsqrt.pop %v655
      %v657 = vmul.f32 %v656, %v655
      %v658 = vmul.f32 %v657, %v656
      %v659 = vmul.f32 0.5, %v658
      %v660 = vsub.f32 1.5, %v659
      %v661 = vmul.f32 %v656, %v660
      %vm662 = vweird.f32 %v655
      %vm663 = vweird.f32 %v656
      %vm664 = vmor %vm662, %vm663
      %v665 = vsel %vm664, %v656, %v661
      %s666 = vtos %v665
      %v667 = vstv %s666
      %v668 = vmul.f32 %v633, %v667
      %v669 = vmul.f32 %v668, %v597
      %v670 = vadd.f32 %v669, %v598
      %v671 = vmax.f32 %v670, 0.0
      %v672 = vperm.slane %v671, 0
      %674 = vrot.lane.b32.xlu0 %v672, 4
      %v675 = vpop.permute.xlu0 %674
      %v677 = vmul.f32 %v594, %v675
      %v678 = vmul.f32 %v595, %v675
      %681 = vrot.lane.b32.xlu0 %v677, 124
      %v682 = vpop.permute.xlu0 %681
      %683 = vrot.lane.b32.xlu0 %v678, 124
      %v684 = vpop.permute.xlu0 %683
      %v687 = vsel %vm601, %v682, 0.0
      %688 = vadd.xlane.f32.xlu0 %v687
      %v689 = vpop.xlane.xlu0 %688
      %v690 = vsel %vm601, %v684, 0.0
      %691 = vadd.xlane.f32.xlu0 %v690
      %v692 = vpop.xlane.xlu0 %691
      %v693 = vadd.f32 %v689, %v594
      %v694 = vadd.f32 %v692, %v595
      %v695 = vxor.u32 %v693, 2147483648
      %v696 = vxor.u32 %v694, 2147483648
      %v697 = vmul.f32 %v695, 1.442695
      %v698 = vpow.pop %v697
      %v699 = vmul.f32 %v696, 1.442695
      %v700 = vpow.pop %v699
      %v701 = vadd.f32 %v698, 1.0
      %v702 = vadd.f32 %v700, 1.0
      %v703 = vrcp.pop %v701
      %v704 = vmul.f32 %v701, %v703
      %v705 = vsub.f32 1.0, %v704
      %v706 = vmul.f32 %v703, %v705
      %v707 = vadd.f32 %v703, %v706
      %vm708 = vweird.f32 %v701
      %vm709 = vweird.f32 %v703
      %vm710 = vmor %vm708, %vm709
      %v711 = vsel %vm710, %v703, %v707
      %v712 = vand.u32 2147483647, %v701
      %vm713 = vcmp.eq.f32.partialorder %v712, 8.507059e+37
      %v714 = vand.u32 %v701, 2147483648
      %v715 = vor.u32 1.1754944e-38, %v714
      %v716 = vsel %vm713, %v715, %v711
      %v717 = vmul.f32 1.0, %v716
      %v718 = vrcp.pop %v702
      %v719 = vmul.f32 %v702, %v718
      %v720 = vsub.f32 1.0, %v719
      %v721 = vmul.f32 %v718, %v720
      %v722 = vadd.f32 %v718, %v721
      %vm723 = vweird.f32 %v702
      %vm724 = vweird.f32 %v718
      %vm725 = vmor %vm723, %vm724
      %v726 = vsel %vm725, %v718, %v722
      %v727 = vand.u32 2147483647, %v702
      %vm728 = vcmp.eq.f32.partialorder %v727, 8.507059e+37
      %v729 = vand.u32 %v702, 2147483648
      %v730 = vor.u32 1.1754944e-38, %v729
      %v731 = vsel %vm728, %v730, %v726
      %v732 = vmul.f32 1.0, %v731
      %734 = vset.pattern.permute.xlu0 8
      %735 = vperm.xlu0 %734, %v717
      %v736 = vpop.permute.xlu0 %735
      %739 = vset.pattern.permute.xlu0 8
      %740 = vperm.xlu0 %739, %v732
      %v741 = vpop.permute.xlu0 %740
      %v743 = vmul.f32 %v226, %v736
      %v744 = vmul.f32 %v227, %v736
      %v745 = vmul.f32 %v228, %v741
      %v746 = vmul.f32 %v229, %v741
      %747 = vst [vmem:[%s225] sm:$0xff] %v743
      %748 = vst [vmem:[%s225 + $0x8] sm:$0xff] %v744
      %749 = vst [vmem:[%s225 + $0x10] sm:$0xff] %v745
      %750 = vst [vmem:[%s225 + $0x18] sm:$0xff] %v746
      %p751 = scmp.lt.s32.totalorder %s17, 1
      %s752 = scalar_select %p751, %s17, 1
      %s753 = smul.addr %s752, 4
      %s754 = smul.addr %s753, 8
      %s755 = scalar_lea.vmem %s5, %s754
      // Predicated region
      $region41: #{global_context_block.1} parent=39 // pred_check
        %p756 = pneg %p145
      $region42: #{global_context_block.1} parent=39 // pred_check_branch
        %758 = sbr.rel (%p756) target = $region44
      $region43: #{global_context_block.1} parent=39 // pred_region
        _
      $region44: #{global_context_block.1} parent=39 // pred_fallthru
        _
    $region40: #{global_context_block.1} parent=5 // pred_fallthru
      _
    %p759 = scmp.le.s32.totalorder 2, %s12
    // Predicated region
    $region45: #{global_context_block.1} parent=5 // pred_check
      %p760 = pneg %p759
    $region46: #{global_context_block.1} parent=5 // pred_check_branch
      %762 = sbr.rel (%p760) target = $region48
    $region47: #{global_context_block.1} parent=5 // pred_region
      %s763 = ssub.s32 %s12, 2
      // Predicated region
      $region49: #{global_context_block.1} parent=47 // pred_check
        %p764 = pneg %p151
      $region50: #{global_context_block.1} parent=47 // pred_check_branch
        %766 = sbr.rel (%p764) target = $region52
      $region51: #{global_context_block.1} parent=47 // pred_region
        %p767 = scmp.lt.s32.totalorder %s18, 1
        %s768 = scalar_select %p767, %s18, 1
        %s769 = smul.addr %s768, 4
        %s770 = smul.addr %s769, 8
        %s771 = scalar_lea.vmem %s5, %s770
      $region52: #{global_context_block.1} parent=47 // pred_fallthru
        _
    $region48: #{global_context_block.1} parent=5 // pred_fallthru
      _
  $region6: #{global_context_block.1} parent=0 // loop_footer
    %s16 = sadd.s32 1, %s12
  $region7: #{global_context_block.1} parent=0 // loop_footer_branch
    %11 = sbr.rel target = $region3
  $region8: #{global_context_block.1} parent=0 // loop_exit
    _

</llo_original>
